<compile_context>
chip_gen: v7x
topology: tpu7x:2x2x1
jax: 0.10.0
libtpu: 0.0.40
codegen_flags: <defaults>
</compile_context>

<pallas_src>
import functools

import jax
import jax.numpy as jnp
from jax.experimental import pallas as pl
from jax.experimental.pallas import tpu as pltpu


def _round_up(x, m):
    return ((x + m - 1) // m) * m


def rbm_logp_kernel(x_ref, w_ref, bh_ref, out_ref, *, n_hidden):
    # x:   [TM, V]      batch tile on sublanes, visible on lanes
    # w:   [H_ext, V]   rows 0..H-1 = W, row H = b_v, rows > H = zero padding
    # bh:  [H, 1]
    # out: [1, TM]      batch on lanes -> lane-dense store
    xb = x_ref[...].astype(jnp.bfloat16)           # binary {0,1}: exact in bf16
    # NT matmul on the MXU, contracting the shared visible (minor) axis:
    #   acc[h, m] = sum_v w[h, v] * x[m, v]
    acc = jax.lax.dot_general(
        w_ref[...], xb,
        dimension_numbers=(((1,), (1,)), ((), ())),
        preferred_element_type=jnp.float32,
    )                                               # [H_ext, TM] f32
    hidden = acc[:n_hidden, :] + bh_ref[...]        # [H, TM]
    sp = jax.nn.softplus(hidden).sum(axis=0, keepdims=True)    # [1, TM]
    vt = acc[n_hidden:n_hidden + 1, :]              # [1, TM] == x @ b_v
    out_ref[...] = sp + vt


def rbm_logp_v_unnorm(x, W, b_h, b_v, *, tm_max=256):
    """Pallas TPU implementation of BernoulliRBM.forward (logp_v_unnorm).

    x: [B, V] (values in {0,1}),  W: [H, V],  b_h: [H],  b_v: [V]  ->  [B]
    """
    B, V = x.shape
    H = W.shape[0]

    # Fold b_v into the weight matrix as one extra row, zero-pad the row count
    # to a multiple of 8 for clean sublane tiling, and quantize to bf16
    # (halves weight HBM traffic, doubles MXU rate; accumulation stays f32).
    h_ext = _round_up(H + 1, 8)
    w_ext = jnp.concatenate(
        [W.astype(jnp.float32),
         b_v[None, :].astype(jnp.float32),
         jnp.zeros((h_ext - (H + 1), V), jnp.float32)],
        axis=0,
    ).astype(jnp.bfloat16)                          # [H_ext, V]
    bh = b_h.reshape(H, 1).astype(jnp.float32)

    # Batch tile: 256 rows suits v6e/v7x's 2x256x256 MXU (pass tm_max=128 on
    # v5e); small batches get a single 8-aligned tile with no padding waste.
    tm = min(tm_max, _round_up(B, 8))
    grid = pl.cdiv(B, tm)
    b_pad = grid * tm
    x_p = jnp.pad(x, ((0, b_pad - B), (0, 0))) if b_pad != B else x

    cost = pl.CostEstimate(
        flops=2 * b_pad * V * h_ext,
        transcendentals=2 * b_pad * H,              # exp + log1p per softplus
        bytes_accessed=(x_p.size * x_p.dtype.itemsize
                        + w_ext.size * 2 + bh.size * 4 + b_pad * 4),
    )

    out = pl.pallas_call(
        functools.partial(rbm_logp_kernel, n_hidden=H),
        out_shape=jax.ShapeDtypeStruct((1, b_pad), jnp.float32),
        grid=(grid,),
        in_specs=[
            pl.BlockSpec((tm, V), lambda i: (i, 0)),        # x: streamed per tile
            pl.BlockSpec((h_ext, V), lambda i: (0, 0)),     # weights: VMEM-resident
            pl.BlockSpec((H, 1), lambda i: (0, 0)),         # hidden bias
        ],
        out_specs=pl.BlockSpec((1, tm), lambda i: (0, i)),  # lane-dense output
        compiler_params=pltpu.CompilerParams(
            dimension_semantics=("parallel",),              # megacore on v7x
        ),
        cost_estimate=cost,
    )(x_p, w_ext, bh)
    return out[0, :B]


def rbm_logp_v_unnorm_ref(x, W, b_h, b_v):
    """Pure-JAX f32 reference for correctness checking."""
    logits = x @ W.T + b_h[None]
    sp = jax.nn.softplus(logits).sum(-1)
    vt = (x * b_v[None]).sum(-1)
    return sp + vt


if __name__ == "__main__":
    # Small shapes consistent with the module: x is [batch, n_visible].
    B, n_visible, n_hidden = 8, 256, 128

    key = jax.random.PRNGKey(0)
    k_w, k_bh, k_bv, k_x = jax.random.split(key, 4)

    # nn.Linear(n_visible, n_hidden)-style init: W ~ U(-1/sqrt(V), 1/sqrt(V)).
    bound = 1.0 / float(n_visible) ** 0.5
    W = jax.random.uniform(k_w, (n_hidden, n_visible), jnp.float32,
                           minval=-bound, maxval=bound)
    # Non-zero biases so both bias terms are exercised (they are learnable
    # parameters of the module; zeros only at init).
    b_h = 0.1 * jax.random.normal(k_bh, (n_hidden,), jnp.float32)
    b_v = 0.1 * jax.random.normal(k_bv, (n_visible,), jnp.float32)

    # Binary visible units (Bernoulli(0.5)), as the RBM expects.
    x = jax.random.bernoulli(k_x, 0.5, (B, n_visible)).astype(jnp.float32)

    out = jax.block_until_ready(jax.jit(rbm_logp_v_unnorm)(x, W, b_h, b_v))
    ref = rbm_logp_v_unnorm_ref(x, W, b_h, b_v)

    assert out.shape == (B,)
    # bf16 weights on the MXU (f32 accumulation): loosen tolerance vs f32 ref.
    assert jnp.allclose(out, ref, rtol=2e-2, atol=2e-2), (out, ref)
    print("KERNEL_OK")
</pallas_src>

<mosaic_0001>
module attributes {stable_mosaic.version = 11 : i64} {
  func.func @rbm_logp_kernel(%arg0: i32, %arg1: memref<8x256xf32, #tpu.memory_space<vmem>>, %arg2: memref<136x256xbf16, #tpu.memory_space<vmem>>, %arg3: memref<128x1xf32, #tpu.memory_space<vmem>>, %arg4: memref<1x8xf32, #tpu.memory_space<vmem>>) attributes {dimension_semantics = [#tpu.dimension_semantics<parallel>], iteration_bounds = array<i64: 1>, scalar_prefetch = 0 : i64, scratch_operands = 0 : i64, tpu.core_type = #tpu.core_type<tc>, window_params = [{transform_indices = @transform_0, window_bounds = array<i64: 8, 256>}, {pipeline_mode = #tpu.pipeline_mode<synchronous>, transform_indices = @transform_1, window_bounds = array<i64: 136, 256>}, {pipeline_mode = #tpu.pipeline_mode<synchronous>, transform_indices = @transform_2, window_bounds = array<i64: 128, 1>}, {transform_indices = @transform_3, window_bounds = array<i64: 1, 8>}]} {
    %c0 = arith.constant 0 : index
    %c0_0 = arith.constant 0 : index
    %0 = vector.load %arg1[%c0, %c0_0] : memref<8x256xf32, #tpu.memory_space<vmem>>, vector<8x256xf32>
    %1 = arith.truncf %0 : vector<8x256xf32> to vector<8x256xbf16>
    %c0_1 = arith.constant 0 : index
    %c0_2 = arith.constant 0 : index
    %2 = vector.load %arg2[%c0_1, %c0_2] : memref<136x256xbf16, #tpu.memory_space<vmem>>, vector<136x256xbf16>
    %cst = arith.constant dense<0.000000e+00> : vector<136x8xf32>
    %3 = tpu.matmul %2, %1, %cst {dimension_numbers = #tpu.dot_dimension_numbers<[1], [1], [0], [0], [0, 0, 1, 0], [], []>} : vector<136x256xbf16>, vector<8x256xbf16>, vector<136x8xf32> -> vector<136x8xf32>
    %4 = vector.extract_strided_slice %3 {offsets = [0, 0], sizes = [128, 8], strides = [1, 1]} : vector<136x8xf32> to vector<128x8xf32>
    %c0_3 = arith.constant 0 : index
    %c0_4 = arith.constant 0 : index
    %5 = vector.load %arg3[%c0_3, %c0_4] : memref<128x1xf32, #tpu.memory_space<vmem>>, vector<128x1xf32>
    %6 = vector.broadcast %5 : vector<128x1xf32> to vector<128x8xf32>
    %7 = arith.addf %4, %6 : vector<128x8xf32>
    %cst_5 = arith.constant 0.000000e+00 : f32
    %8 = vector.broadcast %cst_5 : f32 to vector<128x8xf32>
    %9 = arith.maximumf %7, %8 : vector<128x8xf32>
    %10 = vector.broadcast %cst_5 : f32 to vector<128x8xf32>
    %11 = arith.subf %7, %10 : vector<128x8xf32>
    %12 = arith.cmpf one, %11, %11 : vector<128x8xf32>
    %13 = vector.broadcast %cst_5 : f32 to vector<128x8xf32>
    %14 = arith.addf %7, %13 : vector<128x8xf32>
    %15 = math.absf %11 : vector<128x8xf32>
    %cst_6 = arith.constant 0.000000e+00 : f32
    %16 = vector.broadcast %cst_6 : f32 to vector<128x8xf32>
    %17 = arith.subf %16, %15 : vector<128x8xf32>
    %18 = math.exp %17 : vector<128x8xf32>
    %19 = math.log1p %18 : vector<128x8xf32>
    %20 = arith.addf %9, %19 : vector<128x8xf32>
    %21 = arith.select %12, %14, %20 : vector<128x8xi1>, vector<128x8xf32>
    %cst_7 = arith.constant dense<0.000000e+00> : vector<8xf32>
    %22 = vector.multi_reduction <add>, %21, %cst_7 [0] : vector<128x8xf32> to vector<8xf32>
    %23 = vector.shape_cast %22 : vector<8xf32> to vector<1x8xf32>
    %24 = vector.extract_strided_slice %3 {offsets = [128, 0], sizes = [1, 8], strides = [1, 1]} : vector<136x8xf32> to vector<1x8xf32>
    %25 = arith.addf %23, %24 : vector<1x8xf32>
    %c0_8 = arith.constant 0 : index
    %c0_9 = arith.constant 0 : index
    %26 = vector.load %arg4[%c0_8, %c0_9] : memref<1x8xf32, #tpu.memory_space<vmem>>, vector<1x8xf32>
    tpu.vector_store %arg4[%c0_8, %c0_9], %25 {strides = array<i32>} : memref<1x8xf32, #tpu.memory_space<vmem>>, vector<1x8xf32>,
    return
  }
  func.func @transform_0(%arg0: i32) -> (i32, i32) {
    %c0_i32 = arith.constant 0 : i32
    %c0_i32_0 = arith.constant 0 : i32
    return %arg0, %c0_i32 : i32, i32
  }
  func.func @transform_1(%arg0: i32) -> (i32, i32) {
    %c0_i32 = arith.constant 0 : i32
    %c0_i32_0 = arith.constant 0 : i32
    %c0_i32_1 = arith.constant 0 : i32
    return %c0_i32, %c0_i32_0 : i32, i32
  }
  func.func @transform_2(%arg0: i32) -> (i32, i32) {
    %c0_i32 = arith.constant 0 : i32
    %c0_i32_0 = arith.constant 0 : i32
    %c0_i32_1 = arith.constant 0 : i32
    return %c0_i32, %c0_i32_0 : i32, i32
  }
  func.func @transform_3(%arg0: i32) -> (i32, i32) {
    %c0_i32 = arith.constant 0 : i32
    %c0_i32_0 = arith.constant 0 : i32
    return %c0_i32, %arg0 : i32, i32
  }
}

</mosaic_0001>

<llo_original>
// kernel: rbm_logp_v_unnorm.1
$region0: #{rbm_logp_v_unnorm.1}
  #allocation0 [shape = 'u32[]', space=smem, size = 0x4, offset = 0x4, fixed_abs, tag = 'smem constant byte address 0x4 - core index']
  #allocation1 [shape = 'u32[144,128]{1,0:T(1,128)}', space=vmem, size = 0x12000, scoped, tag = 'internal scratch']
  %s0 = inlined_call_operand.vmem [shape: f32[8,256], index: 0, kind: input, shape index: {}]
  %s1 = inlined_call_operand.vmem [shape: bf16[136,256], index: 1, kind: input, shape index: {}]
  %s2 = inlined_call_operand.vmem [shape: f32[128,1], index: 2, kind: input, shape index: {}]
  %s3 = inlined_call_operand.hbm [shape: f32[1,8], index: 3, kind: output, shape index: {}]
  %s4 = sld [smem:[#allocation0]]
  $region22: #{rbm_logp_v_unnorm.1} parent=0
    _
  %s6 = ssub.s32 1, %s4
  %s7 = scalar_select 0, %s6, %s4
  $region1: #{rbm_logp_v_unnorm.1} parent=0
    #allocation2 [shape = 'u8[512]{0}', space=vmem, size = 0x400, scoped, tag = 'output window, operand 0, single buffered']
    #allocation3 [shape = 's32[1]{0}', space=sflag, size = 0x4, scoped, tag = 'scoped memory for rbm_logp_v_unnorm.1']
    %8 = vsyncpa [#allocation3], 0
    // Predicated region
    $region2: #{rbm_logp_v_unnorm.1} parent=1 // pred_check
      _
    $region3: #{rbm_logp_v_unnorm.1} parent=1 // pred_check_branch
      %10 = sbr.rel (0) target = $region5
    $region4: #{rbm_logp_v_unnorm.1} parent=1 // pred_region
      _
    $region5: #{rbm_logp_v_unnorm.1} parent=1 // pred_fallthru
      _
    // Predicated region
    $region6: #{rbm_logp_v_unnorm.1} parent=1 // pred_check
      _
    $region7: #{rbm_logp_v_unnorm.1} parent=1 // pred_check_branch
      %12 = sbr.rel (0) target = $region9
    $region8: #{rbm_logp_v_unnorm.1} parent=1 // pred_region
      _
    $region9: #{rbm_logp_v_unnorm.1} parent=1 // pred_fallthru
      _
    // Predicated region
    $region10: #{rbm_logp_v_unnorm.1} parent=1 // pred_check
      _
    $region11: #{rbm_logp_v_unnorm.1} parent=1 // pred_check_branch
      %14 = sbr.rel (0) target = $region13
    $region12: #{rbm_logp_v_unnorm.1} parent=1 // pred_region
      _
    $region13: #{rbm_logp_v_unnorm.1} parent=1 // pred_fallthru
      _
    %v16 = vld [vmem:[%s0] sm:$0xff]
    %v17 = vld [vmem:[%s0 + $0x8] sm:$0xff]
    %v18 = vpack.c.bf16 %v16, %v16
    %v19 = vpack.c.bf16 %v17, %v17
    %v20 = vld [vmem:[%s1] sm:$0xff]
    %v21 = vld [vmem:[%s1 + $0x8] sm:$0xff]
    %v22 = vld [vmem:[%s1 + $0x10] sm:$0xff]
    %v23 = vld [vmem:[%s1 + $0x18] sm:$0xff]
    %v24 = vld [vmem:[%s1 + $0x20] sm:$0xff]
    %v25 = vld [vmem:[%s1 + $0x28] sm:$0xff]
    %v26 = vld [vmem:[%s1 + $0x30] sm:$0xff]
    %v27 = vld [vmem:[%s1 + $0x38] sm:$0xff]
    %v28 = vld [vmem:[%s1 + $0x40] sm:$0xff]
    %v29 = vld [vmem:[%s1 + $0x48] sm:$0xff]
    %v30 = vld [vmem:[%s1 + $0x50] sm:$0xff]
    %v31 = vld [vmem:[%s1 + $0x58] sm:$0xff]
    %v32 = vld [vmem:[%s1 + $0x60] sm:$0xff]
    %v33 = vld [vmem:[%s1 + $0x68] sm:$0xff]
    %v34 = vld [vmem:[%s1 + $0x70] sm:$0xff]
    %v35 = vld [vmem:[%s1 + $0x78] sm:$0xff]
    %v36 = vld [vmem:[%s1 + $0x80] sm:$0xff]
    %v54 = vunpack.c.l.b16 %v20
    %v55 = vunpack.c.h.b16 %v20
    %v56 = vunpack.c.l.b16 %v21
    %v57 = vunpack.c.h.b16 %v21
    %v58 = vunpack.c.l.b16 %v22
    %v59 = vunpack.c.h.b16 %v22
    %v60 = vunpack.c.l.b16 %v23
    %v61 = vunpack.c.h.b16 %v23
    %v62 = vunpack.c.l.b16 %v24
    %v63 = vunpack.c.h.b16 %v24
    %v64 = vunpack.c.l.b16 %v25
    %v65 = vunpack.c.h.b16 %v25
    %v66 = vunpack.c.l.b16 %v26
    %v67 = vunpack.c.h.b16 %v26
    %v68 = vunpack.c.l.b16 %v27
    %v69 = vunpack.c.h.b16 %v27
    %v70 = vunpack.c.l.b16 %v28
    %v71 = vunpack.c.h.b16 %v28
    %v72 = vunpack.c.l.b16 %v29
    %v73 = vunpack.c.h.b16 %v29
    %v74 = vunpack.c.l.b16 %v30
    %v75 = vunpack.c.h.b16 %v30
    %v76 = vunpack.c.l.b16 %v31
    %v77 = vunpack.c.h.b16 %v31
    %v78 = vunpack.c.l.b16 %v32
    %v79 = vunpack.c.h.b16 %v32
    %v80 = vunpack.c.l.b16 %v33
    %v81 = vunpack.c.h.b16 %v33
    %v82 = vunpack.c.l.b16 %v34
    %v83 = vunpack.c.h.b16 %v34
    %v84 = vunpack.c.l.b16 %v35
    %v85 = vunpack.c.h.b16 %v35
    %v86 = vunpack.c.l.b16 %v36
    %v87 = vunpack.c.h.b16 %v36
    %v88 = vpack.c.b16 %v56, %v54
    %v89 = vpack.c.b16 %v57, %v55
    %v90 = vpack.c.b16 %v60, %v58
    %v91 = vpack.c.b16 %v61, %v59
    %v92 = vpack.c.b16 %v64, %v62
    %v93 = vpack.c.b16 %v65, %v63
    %v94 = vpack.c.b16 %v68, %v66
    %v95 = vpack.c.b16 %v69, %v67
    %v96 = vpack.c.b16 %v72, %v70
    %v97 = vpack.c.b16 %v73, %v71
    %v98 = vpack.c.b16 %v76, %v74
    %v99 = vpack.c.b16 %v77, %v75
    %v100 = vpack.c.b16 %v80, %v78
    %v101 = vpack.c.b16 %v81, %v79
    %v102 = vpack.c.b16 %v84, %v82
    %v103 = vpack.c.b16 %v85, %v83
    %v104 = vpack.c.b16 %v86, %v86
    %v105 = vpack.c.b16 %v87, %v87
    %124 = vmatprep.subr.bf16.mxu0 %v19
    %125 = vmatpush1.bf16.xpose.msra.mxu0 %v18
    %126 = vmatprep.subr.bf16.mxu0 0
    %127 = vmatpush1.bf16.xpose.msra.mxu0 0
    %128 = vmatprep.subr.bf16.mxu0 0
    %129 = vmatpush1.bf16.xpose.msra.mxu0 0
    %130 = vmatprep.subr.bf16.mxu0 0
    %131 = vmatpush1.bf16.xpose.msra.mxu0 0
    %132 = vmatprep.subr.bf16.mxu0 0
    %133 = vmatpush1.bf16.xpose.msra.mxu0 0
    %134 = vmatprep.subr.bf16.mxu0 0
    %135 = vmatpush1.bf16.xpose.msra.mxu0 0
    %136 = vmatprep.subr.bf16.mxu0 0
    %137 = vmatpush1.bf16.xpose.msra.mxu0 0
    %138 = vmatprep.subr.bf16.mxu0 0
    %139 = vmatpush1.bf16.xpose.msra.mxu0 0
    %140 = vmatprep.subr.bf16.mxu0 0
    %141 = vmatpush1.bf16.xpose.msra.mxu0 0
    %142 = vmatprep.subr.bf16.mxu0 0
    %143 = vmatpush1.bf16.xpose.msra.mxu0 0
    %144 = vmatprep.subr.bf16.mxu0 0
    %145 = vmatpush1.bf16.xpose.msra.mxu0 0
    %146 = vmatprep.subr.bf16.mxu0 0
    %147 = vmatpush1.bf16.xpose.msra.mxu0 0
    %148 = vmatprep.subr.bf16.mxu0 0
    %149 = vmatpush1.bf16.xpose.msra.mxu0 0
    %150 = vmatprep.subr.bf16.mxu0 0
    %151 = vmatpush1.bf16.xpose.msra.mxu0 0
    %152 = vmatprep.subr.bf16.mxu0 0
    %153 = vmatpush1.bf16.xpose.msra.mxu0 0
    %154 = vmatprep.subr.bf16.mxu0 0
    %155 = vmatpush1.bf16.xpose.msra.mxu0 0
    %156 = vmatprep.mubr.bf16.mxu0 %v89
    %157 = vmatmul.mubr.bf16.gmra.mrb[0].mxu0 %v88
    %v158 = vpop.f32.mrb[0].mxu0
    %v159 = vadd.f32 0.0, %v158
    %v160 = vpop.f32.mrb[0].mxu0
    %v161 = vpop.f32.mrb[0].mxu0
    %v162 = vadd.f32 0.0, %v161
    %v163 = vpop.f32.mrb[0].mxu0
    %164 = vmatprep.mubr.bf16.mxu0 %v91
    %165 = vmatmul.mubr.bf16.gmra.mrb[0].mxu0 %v90
    %v166 = vpop.f32.mrb[0].mxu0
    %v167 = vadd.f32 0.0, %v166
    %v168 = vpop.f32.mrb[0].mxu0
    %v169 = vpop.f32.mrb[0].mxu0
    %v170 = vadd.f32 0.0, %v169
    %v171 = vpop.f32.mrb[0].mxu0
    %172 = vmatprep.mubr.bf16.mxu0 %v93
    %173 = vmatmul.mubr.bf16.gmra.mrb[0].mxu0 %v92
    %v174 = vpop.f32.mrb[0].mxu0
    %v175 = vadd.f32 0.0, %v174
    %v176 = vpop.f32.mrb[0].mxu0
    %v177 = vpop.f32.mrb[0].mxu0
    %v178 = vadd.f32 0.0, %v177
    %v179 = vpop.f32.mrb[0].mxu0
    %180 = vmatprep.mubr.bf16.mxu0 %v95
    %181 = vmatmul.mubr.bf16.gmra.mrb[0].mxu0 %v94
    %v182 = vpop.f32.mrb[0].mxu0
    %v183 = vadd.f32 0.0, %v182
    %v184 = vpop.f32.mrb[0].mxu0
    %v185 = vpop.f32.mrb[0].mxu0
    %v186 = vadd.f32 0.0, %v185
    %v187 = vpop.f32.mrb[0].mxu0
    %188 = vmatprep.mubr.bf16.mxu0 %v97
    %189 = vmatmul.mubr.bf16.gmra.mrb[0].mxu0 %v96
    %v190 = vpop.f32.mrb[0].mxu0
    %v191 = vadd.f32 0.0, %v190
    %v192 = vpop.f32.mrb[0].mxu0
    %v193 = vpop.f32.mrb[0].mxu0
    %v194 = vadd.f32 0.0, %v193
    %v195 = vpop.f32.mrb[0].mxu0
    %196 = vmatprep.mubr.bf16.mxu0 %v99
    %197 = vmatmul.mubr.bf16.gmra.mrb[0].mxu0 %v98
    %v198 = vpop.f32.mrb[0].mxu0
    %v199 = vadd.f32 0.0, %v198
    %v200 = vpop.f32.mrb[0].mxu0
    %v201 = vpop.f32.mrb[0].mxu0
    %v202 = vadd.f32 0.0, %v201
    %v203 = vpop.f32.mrb[0].mxu0
    %204 = vmatprep.mubr.bf16.mxu0 %v101
    %205 = vmatmul.mubr.bf16.gmra.mrb[0].mxu0 %v100
    %v206 = vpop.f32.mrb[0].mxu0
    %v207 = vadd.f32 0.0, %v206
    %v208 = vpop.f32.mrb[0].mxu0
    %v209 = vpop.f32.mrb[0].mxu0
    %v210 = vadd.f32 0.0, %v209
    %v211 = vpop.f32.mrb[0].mxu0
    %212 = vmatprep.mubr.bf16.mxu0 %v103
    %213 = vmatmul.mubr.bf16.gmra.mrb[0].mxu0 %v102
    %v214 = vpop.f32.mrb[0].mxu0
    %v215 = vadd.f32 0.0, %v214
    %v216 = vpop.f32.mrb[0].mxu0
    %v217 = vpop.f32.mrb[0].mxu0
    %v218 = vadd.f32 0.0, %v217
    %v219 = vpop.f32.mrb[0].mxu0
    %220 = vmatprep.mubr.bf16.mxu0 %v105
    %221 = vmatmul.mubr.bf16.gmra.mrb[0].mxu0 %v104
    %v222 = vpop.f32.mrb[0].mxu0
    %v223 = vadd.f32 0.0, %v222
    %v224 = vpop.f32.mrb[0].mxu0
    %v225 = vpop.f32.mrb[0].mxu0
    %v226 = vpop.f32.mrb[0].mxu0
    %227 = vdwg.mxu0
    %v228 = vld [vmem:[%s2] sm:$0xff]
    %v229 = vld [vmem:[%s2 + $0x8] sm:$0xff]
    %v230 = vld [vmem:[%s2 + $0x10] sm:$0xff]
    %v231 = vld [vmem:[%s2 + $0x18] sm:$0xff]
    %v232 = vld [vmem:[%s2 + $0x20] sm:$0xff]
    %v233 = vld [vmem:[%s2 + $0x28] sm:$0xff]
    %v234 = vld [vmem:[%s2 + $0x30] sm:$0xff]
    %v235 = vld [vmem:[%s2 + $0x38] sm:$0xff]
    %v236 = vld [vmem:[%s2 + $0x40] sm:$0xff]
    %v237 = vld [vmem:[%s2 + $0x48] sm:$0xff]
    %v238 = vld [vmem:[%s2 + $0x50] sm:$0xff]
    %v239 = vld [vmem:[%s2 + $0x58] sm:$0xff]
    %v240 = vld [vmem:[%s2 + $0x60] sm:$0xff]
    %v241 = vld [vmem:[%s2 + $0x68] sm:$0xff]
    %v242 = vld [vmem:[%s2 + $0x70] sm:$0xff]
    %v243 = vld [vmem:[%s2 + $0x78] sm:$0xff]
    %245 = vset.pattern.permute.xlu0 0
    %246 = vperm.xlu0 %245, %v228
    %v247 = vpop.permute.xlu0 %246
    %250 = vset.pattern.permute.xlu0 0
    %251 = vperm.xlu0 %250, %v229
    %v252 = vpop.permute.xlu0 %251
    %255 = vset.pattern.permute.xlu0 0
    %256 = vperm.xlu0 %255, %v230
    %v257 = vpop.permute.xlu0 %256
    %260 = vset.pattern.permute.xlu0 0
    %261 = vperm.xlu0 %260, %v231
    %v262 = vpop.permute.xlu0 %261
    %265 = vset.pattern.permute.xlu0 0
    %266 = vperm.xlu0 %265, %v232
    %v267 = vpop.permute.xlu0 %266
    %270 = vset.pattern.permute.xlu0 0
    %271 = vperm.xlu0 %270, %v233
    %v272 = vpop.permute.xlu0 %271
    %275 = vset.pattern.permute.xlu0 0
    %276 = vperm.xlu0 %275, %v234
    %v277 = vpop.permute.xlu0 %276
    %280 = vset.pattern.permute.xlu0 0
    %281 = vperm.xlu0 %280, %v235
    %v282 = vpop.permute.xlu0 %281
    %285 = vset.pattern.permute.xlu0 0
    %286 = vperm.xlu0 %285, %v236
    %v287 = vpop.permute.xlu0 %286
    %290 = vset.pattern.permute.xlu0 0
    %291 = vperm.xlu0 %290, %v237
    %v292 = vpop.permute.xlu0 %291
    %295 = vset.pattern.permute.xlu0 0
    %296 = vperm.xlu0 %295, %v238
    %v297 = vpop.permute.xlu0 %296
    %300 = vset.pattern.permute.xlu0 0
    %301 = vperm.xlu0 %300, %v239
    %v302 = vpop.permute.xlu0 %301
    %305 = vset.pattern.permute.xlu0 0
    %306 = vperm.xlu0 %305, %v240
    %v307 = vpop.permute.xlu0 %306
    %310 = vset.pattern.permute.xlu0 0
    %311 = vperm.xlu0 %310, %v241
    %v312 = vpop.permute.xlu0 %311
    %315 = vset.pattern.permute.xlu0 0
    %316 = vperm.xlu0 %315, %v242
    %v317 = vpop.permute.xlu0 %316
    %320 = vset.pattern.permute.xlu0 0
    %321 = vperm.xlu0 %320, %v243
    %v322 = vpop.permute.xlu0 %321
    %v324 = vadd.f32 %v159, %v247
    %v325 = vadd.f32 %v162, %v252
    %v326 = vadd.f32 %v167, %v257
    %v327 = vadd.f32 %v170, %v262
    %v328 = vadd.f32 %v175, %v267
    %v329 = vadd.f32 %v178, %v272
    %v330 = vadd.f32 %v183, %v277
    %v331 = vadd.f32 %v186, %v282
    %v332 = vadd.f32 %v191, %v287
    %v333 = vadd.f32 %v194, %v292
    %v334 = vadd.f32 %v199, %v297
    %v335 = vadd.f32 %v202, %v302
    %v336 = vadd.f32 %v207, %v307
    %v337 = vadd.f32 %v210, %v312
    %v338 = vadd.f32 %v215, %v317
    %v339 = vadd.f32 %v218, %v322
    %v340 = vmax.f32 %v324, 0.0
    %v341 = vmax.f32 %v325, 0.0
    %v342 = vmax.f32 %v326, 0.0
    %v343 = vmax.f32 %v327, 0.0
    %v344 = vmax.f32 %v328, 0.0
    %v345 = vmax.f32 %v329, 0.0
    %v346 = vmax.f32 %v330, 0.0
    %v347 = vmax.f32 %v331, 0.0
    %v348 = vmax.f32 %v332, 0.0
    %v349 = vmax.f32 %v333, 0.0
    %v350 = vmax.f32 %v334, 0.0
    %v351 = vmax.f32 %v335, 0.0
    %v352 = vmax.f32 %v336, 0.0
    %v353 = vmax.f32 %v337, 0.0
    %v354 = vmax.f32 %v338, 0.0
    %v355 = vmax.f32 %v339, 0.0
    %vm356 = vcmp.ne.f32.partialorder %v324, %v324
    %vm357 = vcmp.ne.f32.partialorder %v325, %v325
    %vm358 = vcmp.ne.f32.partialorder %v326, %v326
    %vm359 = vcmp.ne.f32.partialorder %v327, %v327
    %vm360 = vcmp.ne.f32.partialorder %v328, %v328
    %vm361 = vcmp.ne.f32.partialorder %v329, %v329
    %vm362 = vcmp.ne.f32.partialorder %v330, %v330
    %vm363 = vcmp.ne.f32.partialorder %v331, %v331
    %vm364 = vcmp.ne.f32.partialorder %v332, %v332
    %vm365 = vcmp.ne.f32.partialorder %v333, %v333
    %vm366 = vcmp.ne.f32.partialorder %v334, %v334
    %vm367 = vcmp.ne.f32.partialorder %v335, %v335
    %vm368 = vcmp.ne.f32.partialorder %v336, %v336
    %vm369 = vcmp.ne.f32.partialorder %v337, %v337
    %vm370 = vcmp.ne.f32.partialorder %v338, %v338
    %vm371 = vcmp.ne.f32.partialorder %v339, %v339
    %v372 = vadd.f32 %v324, 0.0
    %v373 = vadd.f32 %v325, 0.0
    %v374 = vadd.f32 %v326, 0.0
    %v375 = vadd.f32 %v327, 0.0
    %v376 = vadd.f32 %v328, 0.0
    %v377 = vadd.f32 %v329, 0.0
    %v378 = vadd.f32 %v330, 0.0
    %v379 = vadd.f32 %v331, 0.0
    %v380 = vadd.f32 %v332, 0.0
    %v381 = vadd.f32 %v333, 0.0
    %v382 = vadd.f32 %v334, 0.0
    %v383 = vadd.f32 %v335, 0.0
    %v384 = vadd.f32 %v336, 0.0
    %v385 = vadd.f32 %v337, 0.0
    %v386 = vadd.f32 %v338, 0.0
    %v387 = vadd.f32 %v339, 0.0
    %v388 = vand.u32 2147483647, %v324
    %v389 = vand.u32 2147483647, %v325
    %v390 = vand.u32 2147483647, %v326
    %v391 = vand.u32 2147483647, %v327
    %v392 = vand.u32 2147483647, %v328
    %v393 = vand.u32 2147483647, %v329
    %v394 = vand.u32 2147483647, %v330
    %v395 = vand.u32 2147483647, %v331
    %v396 = vand.u32 2147483647, %v332
    %v397 = vand.u32 2147483647, %v333
    %v398 = vand.u32 2147483647, %v334
    %v399 = vand.u32 2147483647, %v335
    %v400 = vand.u32 2147483647, %v336
    %v401 = vand.u32 2147483647, %v337
    %v402 = vand.u32 2147483647, %v338
    %v403 = vand.u32 2147483647, %v339
    %v404 = vsub.f32 0.0, %v388
    %v405 = vsub.f32 0.0, %v389
    %v406 = vsub.f32 0.0, %v390
    %v407 = vsub.f32 0.0, %v391
    %v408 = vsub.f32 0.0, %v392
    %v409 = vsub.f32 0.0, %v393
    %v410 = vsub.f32 0.0, %v394
    %v411 = vsub.f32 0.0, %v395
    %v412 = vsub.f32 0.0, %v396
    %v413 = vsub.f32 0.0, %v397
    %v414 = vsub.f32 0.0, %v398
    %v415 = vsub.f32 0.0, %v399
    %v416 = vsub.f32 0.0, %v400
    %v417 = vsub.f32 0.0, %v401
    %v418 = vsub.f32 0.0, %v402
    %v419 = vsub.f32 0.0, %v403
    %v420 = vmul.f32 %v404, 1.442695
    %v421 = vpow.pop %v420
    %v422 = vmul.f32 %v405, 1.442695
    %v423 = vpow.pop %v422
    %v424 = vmul.f32 %v406, 1.442695
    %v425 = vpow.pop %v424
    %v426 = vmul.f32 %v407, 1.442695
    %v427 = vpow.pop %v426
    %v428 = vmul.f32 %v408, 1.442695
    %v429 = vpow.pop %v428
    %v430 = vmul.f32 %v409, 1.442695
    %v431 = vpow.pop %v430
    %v432 = vmul.f32 %v410, 1.442695
    %v433 = vpow.pop %v432
    %v434 = vmul.f32 %v411, 1.442695
    %v435 = vpow.pop %v434
    %v436 = vmul.f32 %v412, 1.442695
    %v437 = vpow.pop %v436
    %v438 = vmul.f32 %v413, 1.442695
    %v439 = vpow.pop %v438
    %v440 = vmul.f32 %v414, 1.442695
    %v441 = vpow.pop %v440
    %v442 = vmul.f32 %v415, 1.442695
    %v443 = vpow.pop %v442
    %v444 = vmul.f32 %v416, 1.442695
    %v445 = vpow.pop %v444
    %v446 = vmul.f32 %v417, 1.442695
    %v447 = vpow.pop %v446
    %v448 = vmul.f32 %v418, 1.442695
    %v449 = vpow.pop %v448
    %v450 = vmul.f32 %v419, 1.442695
    %v451 = vpow.pop %v450
    %v452 = vadd.f32 %v421, 1.0
    %v453 = vlog2.pop %v452
    %v454 = vmul.f32 %v453, 0.6931472
    %v455 = vmul.f32 -0.5, %v421
    %v456 = vadd.f32 %v455, 1.0
    %v457 = vmul.f32 %v456, %v421
    %v458 = vand.u32 2147483647, %v421
    %vm459 = vcmp.lt.f32.partialorder %v458, 0.0004427343
    %v460 = vsel %vm459, %v457, %v454
    %v461 = vadd.f32 %v423, 1.0
    %v462 = vlog2.pop %v461
    %v463 = vmul.f32 %v462, 0.6931472
    %v464 = vmul.f32 -0.5, %v423
    %v465 = vadd.f32 %v464, 1.0
    %v466 = vmul.f32 %v465, %v423
    %v467 = vand.u32 2147483647, %v423
    %vm468 = vcmp.lt.f32.partialorder %v467, 0.0004427343
    %v469 = vsel %vm468, %v466, %v463
    %v470 = vadd.f32 %v425, 1.0
    %v471 = vlog2.pop %v470
    %v472 = vmul.f32 %v471, 0.6931472
    %v473 = vmul.f32 -0.5, %v425
    %v474 = vadd.f32 %v473, 1.0
    %v475 = vmul.f32 %v474, %v425
    %v476 = vand.u32 2147483647, %v425
    %vm477 = vcmp.lt.f32.partialorder %v476, 0.0004427343
    %v478 = vsel %vm477, %v475, %v472
    %v479 = vadd.f32 %v427, 1.0
    %v480 = vlog2.pop %v479
    %v481 = vmul.f32 %v480, 0.6931472
    %v482 = vmul.f32 -0.5, %v427
    %v483 = vadd.f32 %v482, 1.0
    %v484 = vmul.f32 %v483, %v427
    %v485 = vand.u32 2147483647, %v427
    %vm486 = vcmp.lt.f32.partialorder %v485, 0.0004427343
    %v487 = vsel %vm486, %v484, %v481
    %v488 = vadd.f32 %v429, 1.0
    %v489 = vlog2.pop %v488
    %v490 = vmul.f32 %v489, 0.6931472
    %v491 = vmul.f32 -0.5, %v429
    %v492 = vadd.f32 %v491, 1.0
    %v493 = vmul.f32 %v492, %v429
    %v494 = vand.u32 2147483647, %v429
    %vm495 = vcmp.lt.f32.partialorder %v494, 0.0004427343
    %v496 = vsel %vm495, %v493, %v490
    %v497 = vadd.f32 %v431, 1.0
    %v498 = vlog2.pop %v497
    %v499 = vmul.f32 %v498, 0.6931472
    %v500 = vmul.f32 -0.5, %v431
    %v501 = vadd.f32 %v500, 1.0
    %v502 = vmul.f32 %v501, %v431
    %v503 = vand.u32 2147483647, %v431
    %vm504 = vcmp.lt.f32.partialorder %v503, 0.0004427343
    %v505 = vsel %vm504, %v502, %v499
    %v506 = vadd.f32 %v433, 1.0
    %v507 = vlog2.pop %v506
    %v508 = vmul.f32 %v507, 0.6931472
    %v509 = vmul.f32 -0.5, %v433
    %v510 = vadd.f32 %v509, 1.0
    %v511 = vmul.f32 %v510, %v433
    %v512 = vand.u32 2147483647, %v433
    %vm513 = vcmp.lt.f32.partialorder %v512, 0.0004427343
    %v514 = vsel %vm513, %v511, %v508
    %v515 = vadd.f32 %v435, 1.0
    %v516 = vlog2.pop %v515
    %v517 = vmul.f32 %v516, 0.6931472
    %v518 = vmul.f32 -0.5, %v435
    %v519 = vadd.f32 %v518, 1.0
    %v520 = vmul.f32 %v519, %v435
    %v521 = vand.u32 2147483647, %v435
    %vm522 = vcmp.lt.f32.partialorder %v521, 0.0004427343
    %v523 = vsel %vm522, %v520, %v517
    %v524 = vadd.f32 %v437, 1.0
    %v525 = vlog2.pop %v524
    %v526 = vmul.f32 %v525, 0.6931472
    %v527 = vmul.f32 -0.5, %v437
    %v528 = vadd.f32 %v527, 1.0
    %v529 = vmul.f32 %v528, %v437
    %v530 = vand.u32 2147483647, %v437
    %vm531 = vcmp.lt.f32.partialorder %v530, 0.0004427343
    %v532 = vsel %vm531, %v529, %v526
    %v533 = vadd.f32 %v439, 1.0
    %v534 = vlog2.pop %v533
    %v535 = vmul.f32 %v534, 0.6931472
    %v536 = vmul.f32 -0.5, %v439
    %v537 = vadd.f32 %v536, 1.0
    %v538 = vmul.f32 %v537, %v439
    %v539 = vand.u32 2147483647, %v439
    %vm540 = vcmp.lt.f32.partialorder %v539, 0.0004427343
    %v541 = vsel %vm540, %v538, %v535
    %v542 = vadd.f32 %v441, 1.0
    %v543 = vlog2.pop %v542
    %v544 = vmul.f32 %v543, 0.6931472
    %v545 = vmul.f32 -0.5, %v441
    %v546 = vadd.f32 %v545, 1.0
    %v547 = vmul.f32 %v546, %v441
    %v548 = vand.u32 2147483647, %v441
    %vm549 = vcmp.lt.f32.partialorder %v548, 0.0004427343
    %v550 = vsel %vm549, %v547, %v544
    %v551 = vadd.f32 %v443, 1.0
    %v552 = vlog2.pop %v551
    %v553 = vmul.f32 %v552, 0.6931472
    %v554 = vmul.f32 -0.5, %v443
    %v555 = vadd.f32 %v554, 1.0
    %v556 = vmul.f32 %v555, %v443
    %v557 = vand.u32 2147483647, %v443
    %vm558 = vcmp.lt.f32.partialorder %v557, 0.0004427343
    %v559 = vsel %vm558, %v556, %v553
    %v560 = vadd.f32 %v445, 1.0
    %v561 = vlog2.pop %v560
    %v562 = vmul.f32 %v561, 0.6931472
    %v563 = vmul.f32 -0.5, %v445
    %v564 = vadd.f32 %v563, 1.0
    %v565 = vmul.f32 %v564, %v445
    %v566 = vand.u32 2147483647, %v445
    %vm567 = vcmp.lt.f32.partialorder %v566, 0.0004427343
    %v568 = vsel %vm567, %v565, %v562
    %v569 = vadd.f32 %v447, 1.0
    %v570 = vlog2.pop %v569
    %v571 = vmul.f32 %v570, 0.6931472
    %v572 = vmul.f32 -0.5, %v447
    %v573 = vadd.f32 %v572, 1.0
    %v574 = vmul.f32 %v573, %v447
    %v575 = vand.u32 2147483647, %v447
    %vm576 = vcmp.lt.f32.partialorder %v575, 0.0004427343
    %v577 = vsel %vm576, %v574, %v571
    %v578 = vadd.f32 %v449, 1.0
    %v579 = vlog2.pop %v578
    %v580 = vmul.f32 %v579, 0.6931472
    %v581 = vmul.f32 -0.5, %v449
    %v582 = vadd.f32 %v581, 1.0
    %v583 = vmul.f32 %v582, %v449
    %v584 = vand.u32 2147483647, %v449
    %vm585 = vcmp.lt.f32.partialorder %v584, 0.0004427343
    %v586 = vsel %vm585, %v583, %v580
    %v587 = vadd.f32 %v451, 1.0
    %v588 = vlog2.pop %v587
    %v589 = vmul.f32 %v588, 0.6931472
    %v590 = vmul.f32 -0.5, %v451
    %v591 = vadd.f32 %v590, 1.0
    %v592 = vmul.f32 %v591, %v451
    %v593 = vand.u32 2147483647, %v451
    %vm594 = vcmp.lt.f32.partialorder %v593, 0.0004427343
    %v595 = vsel %vm594, %v592, %v589
    %v596 = vadd.f32 %v340, %v460
    %v597 = vadd.f32 %v341, %v469
    %v598 = vadd.f32 %v342, %v478
    %v599 = vadd.f32 %v343, %v487
    %v600 = vadd.f32 %v344, %v496
    %v601 = vadd.f32 %v345, %v505
    %v602 = vadd.f32 %v346, %v514
    %v603 = vadd.f32 %v347, %v523
    %v604 = vadd.f32 %v348, %v532
    %v605 = vadd.f32 %v349, %v541
    %v606 = vadd.f32 %v350, %v550
    %v607 = vadd.f32 %v351, %v559
    %v608 = vadd.f32 %v352, %v568
    %v609 = vadd.f32 %v353, %v577
    %v610 = vadd.f32 %v354, %v586
    %v611 = vadd.f32 %v355, %v595
    %v612 = vsel %vm356, %v372, %v596
    %v613 = vsel %vm357, %v373, %v597
    %v614 = vsel %vm358, %v374, %v598
    %v615 = vsel %vm359, %v375, %v599
    %v616 = vsel %vm360, %v376, %v600
    %v617 = vsel %vm361, %v377, %v601
    %v618 = vsel %vm362, %v378, %v602
    %v619 = vsel %vm363, %v379, %v603
    %v620 = vsel %vm364, %v380, %v604
    %v621 = vsel %vm365, %v381, %v605
    %v622 = vsel %vm366, %v382, %v606
    %v623 = vsel %vm367, %v383, %v607
    %v624 = vsel %vm368, %v384, %v608
    %v625 = vsel %vm369, %v385, %v609
    %v626 = vsel %vm370, %v386, %v610
    %v627 = vsel %vm371, %v387, %v611
    %vm628 = vcmask 64512
    %v629 = vsel %vm628, %v612, 0.0
    %v630 = vsel %vm628, %v613, 0.0
    %v631 = vadd.f32 %v629, %v630
    %v632 = vsel %vm628, %v614, 0.0
    %v633 = vadd.f32 %v631, %v632
    %v634 = vsel %vm628, %v615, 0.0
    %v635 = vadd.f32 %v633, %v634
    %v636 = vsel %vm628, %v616, 0.0
    %v637 = vadd.f32 %v635, %v636
    %v638 = vsel %vm628, %v617, 0.0
    %v639 = vadd.f32 %v637, %v638
    %v640 = vsel %vm628, %v618, 0.0
    %v641 = vadd.f32 %v639, %v640
    %v642 = vsel %vm628, %v619, 0.0
    %v643 = vadd.f32 %v641, %v642
    %v644 = vsel %vm628, %v620, 0.0
    %v645 = vadd.f32 %v643, %v644
    %v646 = vsel %vm628, %v621, 0.0
    %v647 = vadd.f32 %v645, %v646
    %v648 = vsel %vm628, %v622, 0.0
    %v649 = vadd.f32 %v647, %v648
    %v650 = vsel %vm628, %v623, 0.0
    %v651 = vadd.f32 %v649, %v650
    %v652 = vsel %vm628, %v624, 0.0
    %v653 = vadd.f32 %v651, %v652
    %v654 = vsel %vm628, %v625, 0.0
    %v655 = vadd.f32 %v653, %v654
    %v656 = vsel %vm628, %v626, 0.0
    %v657 = vadd.f32 %v655, %v656
    %v658 = vsel %vm628, %v627, 0.0
    %v659 = vadd.f32 %v657, %v658
    %v660 = vrot.slane %v659, 4
    %v661 = vadd.f32 %v659, %v660
    %v662 = vrot.slane %v661, 2
    %v663 = vadd.f32 %v661, %v662
    %v664 = vrot.slane %v663, 1
    %v665 = vadd.f32 %v663, %v664
    %v666 = vadd.f32 %v665, %v223
    %vm667 = vcmask 57344
    %668 = vst.msk [vmem:[#allocation2] sm:$0x1] %vm667, %v666
    // Predicated region
    $region14: #{rbm_logp_v_unnorm.1} parent=1 // pred_check
      _
    $region15: #{rbm_logp_v_unnorm.1} parent=1 // pred_check_branch
      %670 = sbr.rel (0) target = $region17
    $region16: #{rbm_logp_v_unnorm.1} parent=1 // pred_region
      %s672 = ssub.s32 16, 16
      %673 = vsyncadd [#allocation3], %s672
      %s675 = sshll.u32 [#allocation2], 4
      %s676 = int_to_ptr.vmem [resolvable:$true] %s675
      %678 = dma.vmem_to_hbm [thread:$0]  %s676, 16, %s3, [#allocation3]
    $region17: #{rbm_logp_v_unnorm.1} parent=1 // pred_fallthru
      _
    // Predicated region
    $region18: #{rbm_logp_v_unnorm.1} parent=1 // pred_check
      _
    $region19: #{rbm_logp_v_unnorm.1} parent=1 // pred_check_branch
      %680 = sbr.rel (0) target = $region21
    $region20: #{rbm_logp_v_unnorm.1} parent=1 // pred_region
      %681 = dma.done [#allocation3], 16
    $region21: #{rbm_logp_v_unnorm.1} parent=1 // pred_fallthru
      _
    %682 = vsyncpa [#allocation3], 1

</llo_original>
